<compile_context>
chip_gen: v5e
topology: v5e:2x2
jax: 0.10.0
libtpu: 0.0.40
codegen_flags: <defaults>
</compile_context>

<pallas_src>
import jax
import jax.numpy as jnp
from jax.experimental import pallas as pl
from jax.experimental.pallas import tpu as pltpu

HEAD_LANES = 128  # lane-dense width for the fused (mean|logstd) head output


def _round_up(x, m):
    return ((x + m - 1) // m) * m


def gaussian_policy_kernel(x_ref, w1_ref, w2_ref, b12_ref, wh_ref, bh_ref, out_ref):
    """Fused trunk + (mean|logstd) head for one batch tile."""
    w1 = w1_ref[...]
    mxu_dtype = w1.dtype

    x = x_ref[...].astype(mxu_dtype)

    # trunk: Linear -> ReLU -> Linear -> ReLU   (f32 accumulate + f32 VPU work)
    h1 = jnp.dot(x, w1, preferred_element_type=jnp.float32) + b12_ref[0:1, :]
    h1 = jnp.maximum(h1, 0.0)

    h2 = (jnp.dot(h1.astype(mxu_dtype), w2_ref[...],
                  preferred_element_type=jnp.float32) + b12_ref[1:2, :])
    h2 = jnp.maximum(h2, 0.0)

    # fused heads: columns [0, A) = mean (pre-tanh), [A, 2A) = logstd, rest pad.
    head = (jnp.dot(h2.astype(mxu_dtype), wh_ref[...],
                    preferred_element_type=jnp.float32) + bh_ref[...])

    out_ref[...] = head.astype(out_ref.dtype)


def pack_params(params, *, mxu_dtype=jnp.bfloat16, out_dtype=None):
    """One-time packing: fuse/pad heads, pack trunk biases, cast MXU operands."""
    if out_dtype is None:
        out_dtype = mxu_dtype
    w1, b1 = params["w1"], params["b1"]
    w2, b2 = params["w2"], params["b2"]
    wm, bm = params["wm"], params["bm"]
    ws, bs = params["ws"], params["bs"]

    unitdim = w2.shape[0]
    action_dim = wm.shape[1]
    head_w = max(HEAD_LANES, _round_up(2 * action_dim, HEAD_LANES))

    w_head = jnp.zeros((unitdim, head_w), jnp.float32)
    w_head = w_head.at[:, :action_dim].set(wm)
    w_head = w_head.at[:, action_dim:2 * action_dim].set(ws)

    b_head = jnp.zeros((1, head_w), jnp.float32)
    b_head = b_head.at[:, :action_dim].set(bm)
    b_head = b_head.at[:, action_dim:2 * action_dim].set(bs)

    b12 = jnp.concatenate([b1, b2], axis=0)  # [2, unitdim], stays f32

    return dict(
        w1=w1.astype(mxu_dtype),
        w2=w2.astype(mxu_dtype),
        b12=b12.astype(jnp.float32),
        w_head=w_head.astype(mxu_dtype),
        b_head=b_head.astype(jnp.float32),
        action_dim=int(action_dim),
        out_dtype=out_dtype,
    )


def _choose_tiling(B, *, num_steps=2, max_tile=2048, row_align=16):
    """Tile the batch so the grid has `num_steps` (or 2k for huge B) steps.

    num_steps=2 keeps both v7x TensorCores busy; on v5e/v6e the one extra step
    costs ~0.35us.  row_align=16 keeps bf16 output blocks natively tiled.
    """
    steps = max(num_steps, pl.cdiv(B, max_tile))
    steps = _round_up(steps, num_steps)
    tile = _round_up(pl.cdiv(B, steps), row_align)
    b_pad = _round_up(B, tile)
    return tile, b_pad


def gaussian_policy_forward(states, packed, *, num_steps=2, max_tile=2048):
    """states: [B, input_dim] f32 -> (mean [B, A], logstd [B, A]) f32."""
    B, input_dim = states.shape
    A = packed["action_dim"]
    head_w = packed["w_head"].shape[1]
    out_dtype = packed["out_dtype"]

    tile, b_pad = _choose_tiling(B, num_steps=num_steps, max_tile=max_tile)
    if b_pad != B:
        states = jnp.pad(states, ((0, b_pad - B), (0, 0)))
    grid = (b_pad // tile,)

    out = pl.pallas_call(
        gaussian_policy_kernel,
        out_shape=jax.ShapeDtypeStruct((b_pad, head_w), out_dtype),
        grid=grid,
        in_specs=[
            pl.BlockSpec((tile, input_dim), lambda i: (i, 0)),          # states
            pl.BlockSpec(packed["w1"].shape, lambda i: (0, 0)),         # resident
            pl.BlockSpec(packed["w2"].shape, lambda i: (0, 0)),         # resident
            pl.BlockSpec(packed["b12"].shape, lambda i: (0, 0)),        # resident
            pl.BlockSpec(packed["w_head"].shape, lambda i: (0, 0)),     # resident
            pl.BlockSpec(packed["b_head"].shape, lambda i: (0, 0)),     # resident
        ],
        out_specs=pl.BlockSpec((tile, head_w), lambda i: (i, 0)),
        compiler_params=pltpu.CompilerParams(
            dimension_semantics=("parallel",)),
    )(states, packed["w1"], packed["w2"], packed["b12"],
      packed["w_head"], packed["b_head"])

    # One contiguous slice of the fused slab, then split; tanh only on the
    # [B, A] mean columns (trivial wrapper-side work).
    fused = out[:B, :2 * A].astype(jnp.float32)
    mean = jnp.tanh(fused[:, :A])
    logstd = fused[:, A:]
    return mean, logstd


def init_params(key, input_dim, action_dim, unitdim):
    """Deterministic init mimicking nn.Linear's U(-1/sqrt(fan_in), +1/sqrt(fan_in))."""
    def linear(k, fan_in, fan_out):
        kw, kb = jax.random.split(k)
        bound = 1.0 / jnp.sqrt(fan_in)
        w = jax.random.uniform(kw, (fan_in, fan_out), jnp.float32, -bound, bound)
        b = jax.random.uniform(kb, (1, fan_out), jnp.float32, -bound, bound)
        return w, b

    k1, k2, k3, k4 = jax.random.split(key, 4)
    w1, b1 = linear(k1, input_dim, unitdim)
    w2, b2 = linear(k2, unitdim, unitdim)
    wm, bm = linear(k3, unitdim, action_dim)
    ws, bs = linear(k4, unitdim, action_dim)
    return dict(w1=w1, b1=b1, w2=w2, b2=b2, wm=wm, bm=bm, ws=ws, bs=bs)


def reference_forward(states, p):
    h = jnp.maximum(states @ p["w1"] + p["b1"], 0.0)
    h = jnp.maximum(h @ p["w2"] + p["b2"], 0.0)
    return jnp.tanh(h @ p["wm"] + p["bm"]), h @ p["ws"] + p["bs"]


if __name__ == "__main__":
    # Small shapes consistent with the module's forward.
    B, INPUT_DIM, ACTION_DIM, UNITDIM = 8, 32, 8, 128

    key = jax.random.PRNGKey(0)
    k_params, k_s1, k_s2 = jax.random.split(key, 3)
    params = init_params(k_params, INPUT_DIM, ACTION_DIM, UNITDIM)

    # --- exact path: f32 MXU operands + f32 output, tiny batch ----------------
    states = jax.random.normal(k_s1, (B, INPUT_DIM), jnp.float32)
    packed_f32 = pack_params(params, mxu_dtype=jnp.float32, out_dtype=jnp.float32)
    mean, logstd = gaussian_policy_forward(states, packed_f32)
    jax.block_until_ready((mean, logstd))

    ref_mean, ref_logstd = reference_forward(states, params)
    assert mean.shape == (B, ACTION_DIM) and logstd.shape == (B, ACTION_DIM)
    assert jnp.allclose(mean, ref_mean, atol=1e-5, rtol=1e-5)
    assert jnp.allclose(logstd, ref_logstd, atol=1e-5, rtol=1e-5)

    # --- fast path: bf16 MXU operands + bf16 fused output, batched grid -------
    B2 = 1000  # non-multiple of the tile to exercise padding / 2-step grid
    states2 = jax.random.normal(k_s2, (B2, INPUT_DIM), jnp.float32)
    packed_bf16 = pack_params(params, mxu_dtype=jnp.bfloat16)  # default on all gens
    mean2, logstd2 = gaussian_policy_forward(states2, packed_bf16)
    jax.block_until_ready((mean2, logstd2))

    ref_mean2, ref_logstd2 = reference_forward(states2, params)
    assert mean2.shape == (B2, ACTION_DIM) and logstd2.shape == (B2, ACTION_DIM)
    assert jnp.allclose(mean2, ref_mean2, atol=5e-2, rtol=5e-2)
    assert jnp.allclose(logstd2, ref_logstd2, atol=5e-2, rtol=5e-2)

    # TODO(synk): sample_action / _compute_logprob_gauss (stochastic sampling
    # with tanh-squash log-prob correction) is not part of forward(); not ported.
    print("KERNEL_OK")
</pallas_src>

<mosaic_0001>
module attributes {stable_mosaic.version = 11 : i64} {
  func.func @gaussian_policy_kernel(%arg0: i32, %arg1: memref<16x32xf32, #tpu.memory_space<vmem>>, %arg2: memref<32x128xf32, #tpu.memory_space<vmem>>, %arg3: memref<128x128xf32, #tpu.memory_space<vmem>>, %arg4: memref<2x128xf32, #tpu.memory_space<vmem>>, %arg5: memref<128x128xf32, #tpu.memory_space<vmem>>, %arg6: memref<1x128xf32, #tpu.memory_space<vmem>>, %arg7: memref<16x128xf32, #tpu.memory_space<vmem>>) attributes {dimension_semantics = [#tpu.dimension_semantics<parallel>], iteration_bounds = array<i64: 1>, scalar_prefetch = 0 : i64, scratch_operands = 0 : i64, tpu.core_type = #tpu.core_type<tc>, window_params = [{transform_indices = @transform_0, window_bounds = array<i64: 16, 32>}, {pipeline_mode = #tpu.pipeline_mode<synchronous>, transform_indices = @transform_1, window_bounds = array<i64: 32, 128>}, {pipeline_mode = #tpu.pipeline_mode<synchronous>, transform_indices = @transform_2, window_bounds = array<i64: 128, 128>}, {pipeline_mode = #tpu.pipeline_mode<synchronous>, transform_indices = @transform_3, window_bounds = array<i64: 2, 128>}, {pipeline_mode = #tpu.pipeline_mode<synchronous>, transform_indices = @transform_4, window_bounds = array<i64: 128, 128>}, {pipeline_mode = #tpu.pipeline_mode<synchronous>, transform_indices = @transform_5, window_bounds = array<i64: 1, 128>}, {transform_indices = @transform_6, window_bounds = array<i64: 16, 128>}]} {
    %c0 = arith.constant 0 : index
    %c0_0 = arith.constant 0 : index
    %0 = vector.load %arg2[%c0, %c0_0] : memref<32x128xf32, #tpu.memory_space<vmem>>, vector<32x128xf32>
    %c0_1 = arith.constant 0 : index
    %c0_2 = arith.constant 0 : index
    %1 = vector.load %arg1[%c0_1, %c0_2] : memref<16x32xf32, #tpu.memory_space<vmem>>, vector<16x32xf32>
    %cst = arith.constant dense<0.000000e+00> : vector<16x128xf32>
    %2 = tpu.matmul %1, %0, %cst {dimension_numbers = #tpu.dot_dimension_numbers<[1], [0], [0], [1], [0, 0, 1, 1], [], []>} : vector<16x32xf32>, vector<32x128xf32>, vector<16x128xf32> -> vector<16x128xf32>
    %c0_3 = arith.constant 0 : index
    %c0_4 = arith.constant 0 : index
    %3 = vector.load %arg4[%c0_3, %c0_4] : memref<2x128xf32, #tpu.memory_space<vmem>>, vector<1x128xf32>
    %4 = vector.broadcast %3 : vector<1x128xf32> to vector<16x128xf32>
    %5 = arith.addf %2, %4 : vector<16x128xf32>
    %cst_5 = arith.constant 0.000000e+00 : f32
    %6 = vector.broadcast %cst_5 : f32 to vector<16x128xf32>
    %7 = arith.maximumf %5, %6 : vector<16x128xf32>
    %c0_6 = arith.constant 0 : index
    %c0_7 = arith.constant 0 : index
    %8 = vector.load %arg3[%c0_6, %c0_7] : memref<128x128xf32, #tpu.memory_space<vmem>>, vector<128x128xf32>
    %cst_8 = arith.constant dense<0.000000e+00> : vector<16x128xf32>
    %9 = tpu.matmul %7, %8, %cst_8 {dimension_numbers = #tpu.dot_dimension_numbers<[1], [0], [0], [1], [0, 0, 1, 1], [], []>} : vector<16x128xf32>, vector<128x128xf32>, vector<16x128xf32> -> vector<16x128xf32>
    %c1 = arith.constant 1 : index
    %c0_9 = arith.constant 0 : index
    %10 = vector.load %arg4[%c1, %c0_9] : memref<2x128xf32, #tpu.memory_space<vmem>>, vector<1x128xf32>
    %11 = vector.broadcast %10 : vector<1x128xf32> to vector<16x128xf32>
    %12 = arith.addf %9, %11 : vector<16x128xf32>
    %cst_10 = arith.constant 0.000000e+00 : f32
    %13 = vector.broadcast %cst_10 : f32 to vector<16x128xf32>
    %14 = arith.maximumf %12, %13 : vector<16x128xf32>
    %c0_11 = arith.constant 0 : index
    %c0_12 = arith.constant 0 : index
    %15 = vector.load %arg5[%c0_11, %c0_12] : memref<128x128xf32, #tpu.memory_space<vmem>>, vector<128x128xf32>
    %cst_13 = arith.constant dense<0.000000e+00> : vector<16x128xf32>
    %16 = tpu.matmul %14, %15, %cst_13 {dimension_numbers = #tpu.dot_dimension_numbers<[1], [0], [0], [1], [0, 0, 1, 1], [], []>} : vector<16x128xf32>, vector<128x128xf32>, vector<16x128xf32> -> vector<16x128xf32>
    %c0_14 = arith.constant 0 : index
    %c0_15 = arith.constant 0 : index
    %17 = vector.load %arg6[%c0_14, %c0_15] : memref<1x128xf32, #tpu.memory_space<vmem>>, vector<1x128xf32>
    %18 = vector.broadcast %17 : vector<1x128xf32> to vector<16x128xf32>
    %19 = arith.addf %16, %18 : vector<16x128xf32>
    %c0_16 = arith.constant 0 : index
    %c0_17 = arith.constant 0 : index
    %20 = vector.load %arg7[%c0_16, %c0_17] : memref<16x128xf32, #tpu.memory_space<vmem>>, vector<16x128xf32>
    tpu.vector_store %arg7[%c0_16, %c0_17], %19 {strides = array<i32>} : memref<16x128xf32, #tpu.memory_space<vmem>>, vector<16x128xf32>,
    return
  }
  func.func @transform_0(%arg0: i32) -> (i32, i32) {
    %c0_i32 = arith.constant 0 : i32
    %c0_i32_0 = arith.constant 0 : i32
    return %arg0, %c0_i32 : i32, i32
  }
  func.func @transform_1(%arg0: i32) -> (i32, i32) {
    %c0_i32 = arith.constant 0 : i32
    %c0_i32_0 = arith.constant 0 : i32
    %c0_i32_1 = arith.constant 0 : i32
    return %c0_i32, %c0_i32_0 : i32, i32
  }
  func.func @transform_2(%arg0: i32) -> (i32, i32) {
    %c0_i32 = arith.constant 0 : i32
    %c0_i32_0 = arith.constant 0 : i32
    %c0_i32_1 = arith.constant 0 : i32
    return %c0_i32, %c0_i32_0 : i32, i32
  }
  func.func @transform_3(%arg0: i32) -> (i32, i32) {
    %c0_i32 = arith.constant 0 : i32
    %c0_i32_0 = arith.constant 0 : i32
    %c0_i32_1 = arith.constant 0 : i32
    return %c0_i32, %c0_i32_0 : i32, i32
  }
  func.func @transform_4(%arg0: i32) -> (i32, i32) {
    %c0_i32 = arith.constant 0 : i32
    %c0_i32_0 = arith.constant 0 : i32
    %c0_i32_1 = arith.constant 0 : i32
    return %c0_i32, %c0_i32_0 : i32, i32
  }
  func.func @transform_5(%arg0: i32) -> (i32, i32) {
    %c0_i32 = arith.constant 0 : i32
    %c0_i32_0 = arith.constant 0 : i32
    %c0_i32_1 = arith.constant 0 : i32
    return %c0_i32, %c0_i32_0 : i32, i32
  }
  func.func @transform_6(%arg0: i32) -> (i32, i32) {
    %c0_i32 = arith.constant 0 : i32
    %c0_i32_0 = arith.constant 0 : i32
    return %arg0, %c0_i32 : i32, i32
  }
}

</mosaic_0001>

<llo_original>
// kernel: tpu_custom_call.1
$region0: #{tpu_custom_call.1}
  #allocation0 [shape = 'u32[]', space=smem, size = 0x4, offset = 0x4, fixed_abs, tag = 'smem constant byte address 0x4 - core index']
  #allocation1 [shape = 'u32[72,128]{1,0:T(1,128)}', space=vmem, size = 0x9000, scoped, tag = 'internal scratch']
  %s0 = inlined_call_operand.hbm [shape: f32[16,32], index: 0, kind: input, shape index: {}]
  %s1 = inlined_call_operand.hbm [shape: f32[32,128], index: 1, kind: input, shape index: {}]
  %s2 = inlined_call_operand.hbm [shape: f32[128,128], index: 2, kind: input, shape index: {}]
  %s3 = inlined_call_operand.vmem [shape: f32[2,128], index: 3, kind: input, shape index: {}]
  %s4 = inlined_call_operand.hbm [shape: f32[128,128], index: 4, kind: input, shape index: {}]
  %s5 = inlined_call_operand.vmem [shape: f32[1,128], index: 5, kind: input, shape index: {}]
  %s6 = inlined_call_operand.hbm [shape: f32[16,128], index: 6, kind: output, shape index: {}]
  %s7 = sld [smem:[#allocation0]]
  $region50: #{tpu_custom_call.1} parent=0
    _
  %s9 = ssub.s32 1, %s7
  %s10 = scalar_select 0, %s9, %s7
  $region1: #{tpu_custom_call.1} parent=0
    #allocation2 [shape = 'u8[8192]{0}', space=vmem, size = 0x2000, scoped, tag = 'input window, operand 0, single buffered']
    #allocation3 [shape = 's32[1]{0}', space=sflag, size = 0x4, scoped, tag = 'scoped memory for tpu_custom_call.1']
    #allocation4 [shape = 's32[1]{0}', space=sflag, size = 0x4, scoped, tag = 'scoped memory for tpu_custom_call.1']
    #allocation5 [shape = 'u8[16384]{0}', space=vmem, size = 0x4000, scoped, tag = 'input window, operand 1, single buffered']
    #allocation6 [shape = 's32[1]{0}', space=sflag, size = 0x4, scoped, tag = 'scoped memory for tpu_custom_call.1']
    #allocation7 [shape = 'u8[65536]{0}', space=vmem, size = 0x10000, scoped, tag = 'input window, operand 2, single buffered']
    #allocation8 [shape = 'u8[65536]{0}', space=vmem, size = 0x10000, scoped, tag = 'input window, operand 4, single buffered']
    #allocation9 [shape = 's32[1]{0}', space=sflag, size = 0x4, scoped, tag = 'scoped memory for tpu_custom_call.1']
    #allocation10 [shape = 'u8[8192]{0}', space=vmem, size = 0x2000, scoped, tag = 'output window, operand 0, single buffered']
    %11 = vsyncpa [#allocation3], 0
    %12 = vsyncpa [#allocation6], 0
    %13 = vsyncpa [#allocation9], 0
    %14 = vsyncpa [#allocation4], 0
    // Predicated region
    $region2: #{tpu_custom_call.1} parent=1 // pred_check
      _
    $region3: #{tpu_custom_call.1} parent=1 // pred_check_branch
      %16 = sbr.rel (0) target = $region5
    $region4: #{tpu_custom_call.1} parent=1 // pred_region
      %18 = vsyncadd [#allocation3], 0
      %s19 = sshll.u32 %s0, 4
      %s20 = int_to_ptr.hbm [resolvable:$true] %s19
      %s21 = sshll.u32 [#allocation2], 4
      %s22 = int_to_ptr.vmem [resolvable:$true] %s21
      %27 = dma.hbm_to_vmem [thread:$0]  %s20, 256, %s22, [#allocation3], 128, 128, 8
    $region5: #{tpu_custom_call.1} parent=1 // pred_fallthru
      _
    // Predicated region
    $region6: #{tpu_custom_call.1} parent=1 // pred_check
      _
    $region7: #{tpu_custom_call.1} parent=1 // pred_check_branch
      %29 = sbr.rel (0) target = $region9
    $region8: #{tpu_custom_call.1} parent=1 // pred_region
      %31 = vsyncadd [#allocation6], 0
      %s32 = sshll.u32 %s1, 4
      %s33 = int_to_ptr.hbm [resolvable:$true] %s32
      %s34 = sshll.u32 [#allocation5], 4
      %s35 = int_to_ptr.vmem [resolvable:$true] %s34
      %40 = dma.hbm_to_vmem [thread:$0]  %s33, 512, %s35, [#allocation6], 128, 128, 8
    $region9: #{tpu_custom_call.1} parent=1 // pred_fallthru
      _
    // Predicated region
    $region10: #{tpu_custom_call.1} parent=1 // pred_check
      _
    $region11: #{tpu_custom_call.1} parent=1 // pred_check_branch
      %42 = sbr.rel (0) target = $region13
    $region12: #{tpu_custom_call.1} parent=1 // pred_region
      %44 = vsyncadd [#allocation6], 0
      %s45 = sshll.u32 %s2, 4
      %s46 = int_to_ptr.hbm [resolvable:$true] %s45
      %s47 = sshll.u32 [#allocation7], 4
      %s48 = int_to_ptr.vmem [resolvable:$true] %s47
      %53 = dma.hbm_to_vmem [thread:$0]  %s46, 2048, %s48, [#allocation6], 128, 128, 8
    $region13: #{tpu_custom_call.1} parent=1 // pred_fallthru
      _
    // Predicated region
    $region14: #{tpu_custom_call.1} parent=1 // pred_check
      _
    $region15: #{tpu_custom_call.1} parent=1 // pred_check_branch
      %55 = sbr.rel (0) target = $region17
    $region16: #{tpu_custom_call.1} parent=1 // pred_region
      _
    $region17: #{tpu_custom_call.1} parent=1 // pred_fallthru
      _
    // Predicated region
    $region18: #{tpu_custom_call.1} parent=1 // pred_check
      _
    $region19: #{tpu_custom_call.1} parent=1 // pred_check_branch
      %57 = sbr.rel (0) target = $region21
    $region20: #{tpu_custom_call.1} parent=1 // pred_region
      %59 = vsyncadd [#allocation9], 0
      %s60 = sshll.u32 %s4, 4
      %s61 = int_to_ptr.hbm [resolvable:$true] %s60
      %s62 = sshll.u32 [#allocation8], 4
      %s63 = int_to_ptr.vmem [resolvable:$true] %s62
      %68 = dma.hbm_to_vmem [thread:$0]  %s61, 2048, %s63, [#allocation9], 128, 128, 8
    $region21: #{tpu_custom_call.1} parent=1 // pred_fallthru
      _
    // Predicated region
    $region22: #{tpu_custom_call.1} parent=1 // pred_check
      _
    $region23: #{tpu_custom_call.1} parent=1 // pred_check_branch
      %70 = sbr.rel (0) target = $region25
    $region24: #{tpu_custom_call.1} parent=1 // pred_region
      _
    $region25: #{tpu_custom_call.1} parent=1 // pred_fallthru
      _
    // Predicated region
    $region26: #{tpu_custom_call.1} parent=1 // pred_check
      _
    $region27: #{tpu_custom_call.1} parent=1 // pred_check_branch
      %72 = sbr.rel (0) target = $region29
    $region28: #{tpu_custom_call.1} parent=1 // pred_region
      %74 = dma.done [#allocation3], 256
    $region29: #{tpu_custom_call.1} parent=1 // pred_fallthru
      _
    // Predicated region
    $region30: #{tpu_custom_call.1} parent=1 // pred_check
      _
    $region31: #{tpu_custom_call.1} parent=1 // pred_check_branch
      %76 = sbr.rel (0) target = $region33
    $region32: #{tpu_custom_call.1} parent=1 // pred_region
      %78 = dma.done [#allocation6], 512
    $region33: #{tpu_custom_call.1} parent=1 // pred_fallthru
      _
    // Predicated region
    $region34: #{tpu_custom_call.1} parent=1 // pred_check
      _
    $region35: #{tpu_custom_call.1} parent=1 // pred_check_branch
      %80 = sbr.rel (0) target = $region37
    $region36: #{tpu_custom_call.1} parent=1 // pred_region
      %82 = dma.done [#allocation6], 2048
    $region37: #{tpu_custom_call.1} parent=1 // pred_fallthru
      _
    // Predicated region
    $region38: #{tpu_custom_call.1} parent=1 // pred_check
      _
    $region39: #{tpu_custom_call.1} parent=1 // pred_check_branch
      %84 = sbr.rel (0) target = $region41
    $region40: #{tpu_custom_call.1} parent=1 // pred_region
      %86 = dma.done [#allocation9], 2048
    $region41: #{tpu_custom_call.1} parent=1 // pred_fallthru
      _
    %v87 = vld [vmem:[#allocation5] sm:$0xff]
    %v88 = vld [vmem:[#allocation5 + $0x8] sm:$0xff]
    %v89 = vld [vmem:[#allocation5 + $0x10] sm:$0xff]
    %v90 = vld [vmem:[#allocation5 + $0x18] sm:$0xff]
    %v91 = vld [vmem:[#allocation2] sm:$0xff]
    %v92 = vld [vmem:[#allocation2 + $0x8] sm:$0xff]
    %v93 = vld [vmem:[%s3] sm:$0x1]
    %v94 = vperm.slane %v93, 0
    %vm95 = vcmask 261120
    %v97 = vsel %vm95, %v91, 0
    %v100 = vsel %vm95, %v92, 0
    %102 = vmatpush.msra.mxu0 0.0
    %103 = vmatpush.msra.mxu0 0.0
    %104 = vmatpush.msra.mxu0 0.0
    %105 = vmatpush.msra.mxu0 0.0
    %106 = vmatpush.msra.mxu0 0.0
    %107 = vmatpush.msra.mxu0 0.0
    %108 = vmatpush.msra.mxu0 0.0
    %109 = vmatpush.msra.mxu0 0.0
    %110 = vmatpush.msra.mxu0 0.0
    %111 = vmatpush.msra.mxu0 0.0
    %112 = vmatpush.msra.mxu0 0.0
    %113 = vmatpush.msra.mxu0 0.0
    %114 = vmatpush.msra.mxu0 %v90
    %115 = vmatpush.msra.mxu0 %v89
    %116 = vmatpush.msra.mxu0 %v88
    %117 = vmatpush.msra.mxu0 %v87
    %118 = vmatmul.f32.gmra.mxu0 %v97
    %v119 = vpop.f32.mrf.mxu0
    %v120 = vadd.f32 %v94, %v119
    %121 = vmatmul.f32.gmra.mxu0 %v100
    %v122 = vpop.f32.mrf.mxu0
    %v123 = vadd.f32 %v94, %v122
    %124 = vdwg.mxu0
    %v125 = vmax.f32 %v120, 0.0
    %v126 = vmax.f32 %v123, 0.0
    %v127 = vld [vmem:[#allocation7] sm:$0xff]
    %v128 = vld [vmem:[#allocation7 + $0x8] sm:$0xff]
    %v129 = vld [vmem:[#allocation7 + $0x10] sm:$0xff]
    %v130 = vld [vmem:[#allocation7 + $0x18] sm:$0xff]
    %v131 = vld [vmem:[#allocation7 + $0x20] sm:$0xff]
    %v132 = vld [vmem:[#allocation7 + $0x28] sm:$0xff]
    %v133 = vld [vmem:[#allocation7 + $0x30] sm:$0xff]
    %v134 = vld [vmem:[#allocation7 + $0x38] sm:$0xff]
    %v135 = vld [vmem:[#allocation7 + $0x40] sm:$0xff]
    %v136 = vld [vmem:[#allocation7 + $0x48] sm:$0xff]
    %v137 = vld [vmem:[#allocation7 + $0x50] sm:$0xff]
    %v138 = vld [vmem:[#allocation7 + $0x58] sm:$0xff]
    %v139 = vld [vmem:[#allocation7 + $0x60] sm:$0xff]
    %v140 = vld [vmem:[#allocation7 + $0x68] sm:$0xff]
    %v141 = vld [vmem:[#allocation7 + $0x70] sm:$0xff]
    %v142 = vld [vmem:[#allocation7 + $0x78] sm:$0xff]
    %v143 = vld [vmem:[%s3 + $0x1] sm:$0x1]
    %v144 = vperm.slane %v143, 0
    %145 = vmatpush.msra.mxu0 %v142
    %146 = vmatpush.msra.mxu0 %v141
    %147 = vmatpush.msra.mxu0 %v140
    %148 = vmatpush.msra.mxu0 %v139
    %149 = vmatpush.msra.mxu0 %v138
    %150 = vmatpush.msra.mxu0 %v137
    %151 = vmatpush.msra.mxu0 %v136
    %152 = vmatpush.msra.mxu0 %v135
    %153 = vmatpush.msra.mxu0 %v134
    %154 = vmatpush.msra.mxu0 %v133
    %155 = vmatpush.msra.mxu0 %v132
    %156 = vmatpush.msra.mxu0 %v131
    %157 = vmatpush.msra.mxu0 %v130
    %158 = vmatpush.msra.mxu0 %v129
    %159 = vmatpush.msra.mxu0 %v128
    %160 = vmatpush.msra.mxu0 %v127
    %161 = vmatmul.f32.gmra.mxu0 %v125
    %v162 = vpop.f32.mrf.mxu0
    %v163 = vadd.f32 %v144, %v162
    %164 = vmatmul.f32.gmra.mxu0 %v126
    %v165 = vpop.f32.mrf.mxu0
    %v166 = vadd.f32 %v144, %v165
    %167 = vdwg.mxu0
    %v168 = vmax.f32 %v163, 0.0
    %v169 = vmax.f32 %v166, 0.0
    %v170 = vld [vmem:[#allocation8] sm:$0xff]
    %v171 = vld [vmem:[#allocation8 + $0x8] sm:$0xff]
    %v172 = vld [vmem:[#allocation8 + $0x10] sm:$0xff]
    %v173 = vld [vmem:[#allocation8 + $0x18] sm:$0xff]
    %v174 = vld [vmem:[#allocation8 + $0x20] sm:$0xff]
    %v175 = vld [vmem:[#allocation8 + $0x28] sm:$0xff]
    %v176 = vld [vmem:[#allocation8 + $0x30] sm:$0xff]
    %v177 = vld [vmem:[#allocation8 + $0x38] sm:$0xff]
    %v178 = vld [vmem:[#allocation8 + $0x40] sm:$0xff]
    %v179 = vld [vmem:[#allocation8 + $0x48] sm:$0xff]
    %v180 = vld [vmem:[#allocation8 + $0x50] sm:$0xff]
    %v181 = vld [vmem:[#allocation8 + $0x58] sm:$0xff]
    %v182 = vld [vmem:[#allocation8 + $0x60] sm:$0xff]
    %v183 = vld [vmem:[#allocation8 + $0x68] sm:$0xff]
    %v184 = vld [vmem:[#allocation8 + $0x70] sm:$0xff]
    %v185 = vld [vmem:[#allocation8 + $0x78] sm:$0xff]
    %v186 = vld [vmem:[%s5] sm:$0x1]
    %v188 = vperm.slane %v186, 0
    %190 = vmatpush.msra.mxu0 %v185
    %191 = vmatpush.msra.mxu0 %v184
    %192 = vmatpush.msra.mxu0 %v183
    %193 = vmatpush.msra.mxu0 %v182
    %194 = vmatpush.msra.mxu0 %v181
    %195 = vmatpush.msra.mxu0 %v180
    %196 = vmatpush.msra.mxu0 %v179
    %197 = vmatpush.msra.mxu0 %v178
    %198 = vmatpush.msra.mxu0 %v177
    %199 = vmatpush.msra.mxu0 %v176
    %200 = vmatpush.msra.mxu0 %v175
    %201 = vmatpush.msra.mxu0 %v174
    %202 = vmatpush.msra.mxu0 %v173
    %203 = vmatpush.msra.mxu0 %v172
    %204 = vmatpush.msra.mxu0 %v171
    %205 = vmatpush.msra.mxu0 %v170
    %206 = vmatmul.f32.gmra.mxu0 %v168
    %v207 = vpop.f32.mrf.mxu0
    %v208 = vadd.f32 %v188, %v207
    %209 = vmatmul.f32.gmra.mxu0 %v169
    %v210 = vpop.f32.mrf.mxu0
    %v211 = vadd.f32 %v188, %v210
    %212 = vdwg.mxu0
    %213 = vst [vmem:[#allocation10] sm:$0xff] %v208
    %214 = vst [vmem:[#allocation10 + $0x8] sm:$0xff] %v211
    // Predicated region
    $region42: #{tpu_custom_call.1} parent=1 // pred_check
      _
    $region43: #{tpu_custom_call.1} parent=1 // pred_check_branch
      %216 = sbr.rel (0) target = $region45
    $region44: #{tpu_custom_call.1} parent=1 // pred_region
      %218 = vsyncadd [#allocation4], 0
      %s219 = sshll.u32 [#allocation10], 4
      %s220 = int_to_ptr.vmem [resolvable:$true] %s219
      %s221 = sshll.u32 %s6, 4
      %s222 = int_to_ptr.hbm [resolvable:$true] %s221
      %227 = dma.vmem_to_hbm [thread:$0]  %s220, 256, %s222, [#allocation4], 128, 128, 8
    $region45: #{tpu_custom_call.1} parent=1 // pred_fallthru
      _
    // Predicated region
    $region46: #{tpu_custom_call.1} parent=1 // pred_check
      _
    $region47: #{tpu_custom_call.1} parent=1 // pred_check_branch
      %229 = sbr.rel (0) target = $region49
    $region48: #{tpu_custom_call.1} parent=1 // pred_region
      %231 = dma.done [#allocation4], 256
    $region49: #{tpu_custom_call.1} parent=1 // pred_fallthru
      _
    %232 = vsyncpa [#allocation3], 1
    %233 = vsyncpa [#allocation6], 1
    %234 = vsyncpa [#allocation9], 1
    %235 = vsyncpa [#allocation4], 1

</llo_original>
